<compile_context>
chip_gen: v7x
topology: tpu7x:2x2x1
jax: 0.10.0
libtpu: 0.0.40
codegen_flags: <defaults>
</compile_context>

<pallas_src>
import functools

import jax
import jax.numpy as jnp
from jax.experimental import pallas as pl
from jax.experimental.pallas import tpu as pltpu


# --------------------------------------------------------------------------- #
# helpers
# --------------------------------------------------------------------------- #
def _vmem_capacity_bytes():
    """Per-core VMEM capacity; conservative 64 MiB (v7x-sized) fallback if the query fails."""
    try:
        cap = int(pltpu.get_tpu_info().vmem_capacity_bytes)
        if cap > 0:
            return cap
    except Exception:
        pass
    return 64 << 20


def _pick_tile(total, target, quantum):
    """Largest quantum-aligned tile <= target; prefer an exact divisor of `total` (so no mask
    code is emitted), falling back to a masked non-divisor tile."""
    if total <= target:
        return total
    t = max(quantum, (target // quantum) * quantum)
    c = t
    lo = max(quantum, t - 64 * quantum)          # bounded trace-time search
    while c >= lo:
        if total % c == 0:
            return c
        c -= quantum
    return t


def _sum_last2(x):
    """(C, R, L) -> (C, 1, 1) via two single-axis reductions (Mosaic-friendly)."""
    return jnp.sum(jnp.sum(x, axis=2, keepdims=True), axis=1, keepdims=True)


# --------------------------------------------------------------------------- #
# dice partial-sum kernel
# --------------------------------------------------------------------------- #
def _dice_sums_kernel(pred_ref, tgt_ref, out_ref, inter_acc, psum_acc, osum_acc,
                      *, hw_total, tile_elems, tiles_per_split, needs_mask, approx_recip):
    # pred_ref : (1, C, RB, LB) logits tile (native dtype, cast to f32 after load)
    # tgt_ref  : (1, RB, LB)    int32 class-index tile
    # out_ref  : (1, 1, 3, C)   f32 [intersection; sum(p); sum(onehot)], written at last HW step
    # *_acc    : (C, 1, 1)      f32 running sums across the HW tiles of this (n, s)
    s = pl.program_id(1)
    hw = pl.program_id(2)
    n_hw = pl.num_programs(2)

    @pl.when(hw == 0)
    def _():
        inter_acc[...] = jnp.zeros_like(inter_acc)
        psum_acc[...] = jnp.zeros_like(psum_acc)
        osum_acc[...] = jnp.zeros_like(osum_acc)

    logits = pred_ref[0].astype(jnp.float32)                     # (C, RB, LB)
    C, RB, LB = logits.shape
    tgt = tgt_ref[...]                                           # (1, RB, LB) int32

    # Channel softmax: elementwise work runs on full (8,128) vregs over (RB, LB);
    # reductions over the leading C axis are plain VPU ops across slabs.
    m = jnp.max(logits, axis=0, keepdims=True)                   # (1, RB, LB)
    e = jnp.exp(logits - m)                                      # (C, RB, LB)
    inv = pl.reciprocal(jnp.sum(e, axis=0, keepdims=True), approx=approx_recip)
    p = e * inv                                                  # (C, RB, LB)

    class_ids = jax.lax.broadcasted_iota(jnp.int32, (C, RB, LB), 0)
    match = class_ids == tgt                                     # (C, RB, LB)

    if needs_mask:
        # Unclamped flat pixel index of every element of this tile.  Tiles whose BlockSpec
        # index was clamped (fully out of range) become all-invalid here and contribute zero.
        r_iota = jax.lax.broadcasted_iota(jnp.int32, (1, RB, LB), 1)
        l_iota = jax.lax.broadcasted_iota(jnp.int32, (1, RB, LB), 2)
        tile_start = (s * tiles_per_split + hw) * tile_elems
        valid = (tile_start + r_iota * LB + l_iota) < hw_total   # (1, RB, LB)
        match = match & valid
        p_sum = jnp.where(valid, p, 0.0)                         # kills stale / NaN padded lanes
    else:
        p_sum = p

    onehot = match.astype(jnp.float32)
    inter_acc[...] += _sum_last2(jnp.where(match, p, 0.0))
    psum_acc[...] += _sum_last2(p_sum)
    osum_acc[...] += _sum_last2(onehot)

    @pl.when(hw == n_hw - 1)
    def _():
        # Layout-safe relayout of C per-class scalars (C,1,1) into a lane-major (3, C) block.
        rows = jax.lax.broadcasted_iota(jnp.int32, (C, 3, C), 0)
        cols = jax.lax.broadcasted_iota(jnp.int32, (C, 3, C), 2)
        which = jax.lax.broadcasted_iota(jnp.int32, (C, 3, C), 1)
        vals = jnp.where(which == 0, inter_acc[...],
                         jnp.where(which == 1, psum_acc[...], osum_acc[...]))
        out3 = jnp.sum(jnp.where(rows == cols, vals, 0.0), axis=0)   # (3, C)
        out_ref[...] = out3[None, None]


def _dice_partial_sums(seg_pred_flat, seg_target_flat, *, max_tile_px=None, approx_recip=True):
    """seg_pred_flat: (N, C, HW) logits; seg_target_flat: (N, HW) int.
    Returns f32 (N, S, 3, C) partial sums [intersection, sum(p), sum(onehot)]."""
    N, C, HW = seg_pred_flat.shape
    itemsize = jnp.dtype(seg_pred_flat.dtype).itemsize

    # View geometry: prefer a lane-dense (HW/128, 128) row layout so C stays off the vreg axes.
    if HW % 128 == 0 and HW > 128:
        R_total, L = HW // 128, 128
    else:
        R_total, L = 1, HW

    # Generation-aware tile sizing (v7x: 64 MiB VMEM/TC -> ~12 MiB pred tiles; v5e/v6e: ~16 MiB).
    cap = _vmem_capacity_bytes()
    pred_tile_cap = (12 << 20) if cap <= (65 << 20) else (16 << 20)
    target_px = max(1024, pred_tile_cap // max(1, C * itemsize))
    if max_tile_px is not None:
        target_px = int(max_tile_px)

    if R_total > 1:                                   # row-tiled path (L == 128)
        RB = _pick_tile(R_total, max(8, target_px // L), 8)
        LB = L
        num_blocks = pl.cdiv(R_total, RB)
        l_blocks = 1
    else:                                             # lane-tiled fallback (HW % 128 != 0)
        RB = 1
        LB = _pick_tile(L, max(128, target_px), 128)
        num_blocks = pl.cdiv(L, LB)
        l_blocks = num_blocks

    tile_elems = RB * LB

    # Optional HW super-chunk split so v7x megacore has >= 2 parallel work units when N is 1/odd.
    S = 2 if (num_blocks >= 2 and N % 2 == 1) else 1
    tiles_per_split = pl.cdiv(num_blocks, S)
    needs_mask = (S * tiles_per_split * tile_elems) != HW
    clamp = (S * tiles_per_split) > num_blocks
    max_blk = num_blocks - 1

    def _blk(s, hw):
        b = s * tiles_per_split + hw
        if clamp:                                     # phantom tiles re-read the last valid block;
            b = jnp.minimum(b, max_blk)               # their contribution is mask-zeroed in-kernel
        return b

    if l_blocks == 1:
        pred_map = lambda n, s, hw: (n, 0, _blk(s, hw), 0)
        tgt_map = lambda n, s, hw: (n, _blk(s, hw), 0)
    else:
        pred_map = lambda n, s, hw: (n, 0, 0, _blk(s, hw))
        tgt_map = lambda n, s, hw: (n, 0, _blk(s, hw))

    pred4 = seg_pred_flat.reshape(N, C, R_total, L)                    # free metadata reshape
    tgt3 = seg_target_flat.astype(jnp.int32).reshape(N, R_total, L)

    # VMEM budget: double-buffered pred + target tiles + tiny scratch/out + headroom.
    pred_tile_bytes = C * tile_elems * itemsize
    tgt_tile_bytes = tile_elems * 4
    vmem_limit = 2 * (pred_tile_bytes + tgt_tile_bytes) + (1 << 20) + (8 << 20)
    vmem_limit = int(min(max(vmem_limit, 16 << 20), cap - (12 << 20)))

    kernel = functools.partial(
        _dice_sums_kernel, hw_total=HW, tile_elems=tile_elems,
        tiles_per_split=tiles_per_split, needs_mask=needs_mask, approx_recip=approx_recip)

    return pl.pallas_call(
        kernel,
        out_shape=jax.ShapeDtypeStruct((N, S, 3, C), jnp.float32),
        grid_spec=pltpu.PrefetchScalarGridSpec(
            num_scalar_prefetch=0,
            grid=(N, S, tiles_per_split),
            in_specs=[
                pl.BlockSpec((1, C, RB, LB), pred_map),
                pl.BlockSpec((1, RB, LB), tgt_map),
            ],
            out_specs=pl.BlockSpec((1, 1, 3, C), lambda n, s, hw: (n, s, 0, 0)),
            scratch_shapes=[pltpu.VMEM((C, 1, 1), jnp.float32)] * 3,
        ),
        compiler_params=pltpu.CompilerParams(
            dimension_semantics=("parallel", "parallel", "arbitrary"),
            vmem_limit_bytes=vmem_limit,
        ),
    )(pred4, tgt3)


def dice_per_class(seg_pred_flat, seg_target_flat, *, eps=1e-6, max_tile_px=None,
                   approx_recip=True):
    """(N, C, HW) logits + (N, HW) targets -> (N, C) dice scores."""
    sums = _dice_partial_sums(seg_pred_flat, seg_target_flat,
                              max_tile_px=max_tile_px, approx_recip=approx_recip)
    sums = jnp.sum(sums, axis=1)                       # (N, 3, C): combine HW super-chunks
    inter, psum, osum = sums[:, 0], sums[:, 1], sums[:, 2]
    return (2.0 * inter + eps) / (psum + osum + eps)


# --------------------------------------------------------------------------- #
# cross-entropy kernel (row-blocked)
# --------------------------------------------------------------------------- #
def _ce_kernel(logits_ref, tgt_ref, out_ref, *, n_total, inv_n):
    # logits_ref: (TN, K) ; tgt_ref: (TN, 1) int32 ; out_ref: (1, 1) f32 resident mean accumulator
    i = pl.program_id(0)

    @pl.when(i == 0)
    def _():
        out_ref[...] = jnp.zeros_like(out_ref)

    logits = logits_ref[...].astype(jnp.float32)                       # (TN, K)
    TN, K = logits.shape
    m = jnp.max(logits, axis=1, keepdims=True)                         # (TN, 1)
    lse = m + jnp.log(jnp.sum(jnp.exp(logits - m), axis=1, keepdims=True))
    ids = jax.lax.broadcasted_iota(jnp.int32, (TN, K), 1)
    picked = jnp.sum(jnp.where(ids == tgt_ref[...], logits, 0.0),
                     axis=1, keepdims=True)                            # (TN, 1)
    per_row = lse - picked

    if (n_total % TN) != 0:                                            # mask stale rows of last block
        rows = jax.lax.broadcasted_iota(jnp.int32, (TN, 1), 0)
        per_row = jnp.where((i * TN + rows) < n_total, per_row, 0.0)

    out_ref[...] += jnp.sum(per_row, axis=0, keepdims=True) * inv_n


def cross_entropy_mean(cls_pred, cls_target_col, *, row_tile=None):
    """cls_pred: (N, K) float logits; cls_target_col: (N, 1) int -> (1, 1) mean cross-entropy."""
    N, K = cls_pred.shape
    TN = min(N, 512 if row_tile is None else int(row_tile))
    if TN < N:
        TN = max(8, (TN // 8) * 8)       # row blocks must be multiples of 8 (or the full N)
    kernel = functools.partial(_ce_kernel, n_total=N, inv_n=1.0 / N)
    return pl.pallas_call(
        kernel,
        out_shape=jax.ShapeDtypeStruct((1, 1), jnp.float32),
        grid_spec=pltpu.PrefetchScalarGridSpec(
            num_scalar_prefetch=0,
            grid=(pl.cdiv(N, TN),),
            in_specs=[
                pl.BlockSpec((TN, K), lambda i: (i, 0)),
                pl.BlockSpec((TN, 1), lambda i: (i, 0)),
            ],
            out_specs=pl.BlockSpec((1, 1), lambda i: (0, 0)),
        ),
        compiler_params=pltpu.CompilerParams(dimension_semantics=("arbitrary",)),
    )(cls_pred, cls_target_col.astype(jnp.int32))


# --------------------------------------------------------------------------- #
# wrapper (DualTaskLoss.forward)
# --------------------------------------------------------------------------- #
def dual_task_loss(seg_pred, seg_target, cls_pred, cls_target,
                   seg_weight=1.0, cls_weight=1.0, *, eps=1e-6):
    """seg_pred: (N, C, H, W) float logits (f32/bf16, streamed in native dtype);
    seg_target: (N, H, W) int; cls_pred: (N, K) float logits; cls_target: (N,) int."""
    N, C, H, W = seg_pred.shape
    dice = dice_per_class(seg_pred.reshape(N, C, H * W),
                          seg_target.reshape(N, H * W), eps=eps)       # (N, C)
    seg_loss = 1.0 - jnp.mean(dice)
    ce = cross_entropy_mean(cls_pred, cls_target.reshape(-1, 1))[0, 0]
    return seg_weight * seg_loss + cls_weight * ce


# --------------------------------------------------------------------------- #
# pure-JAX references
# --------------------------------------------------------------------------- #
def _reference_dice(seg_pred_flat, seg_target_flat, eps=1e-6):
    p = jax.nn.softmax(seg_pred_flat.astype(jnp.float32), axis=1)
    C = seg_pred_flat.shape[1]
    onehot = jax.nn.one_hot(seg_target_flat, C, axis=1, dtype=p.dtype)
    inter = jnp.sum(p * onehot, axis=2)
    denom = jnp.sum(p, axis=2) + jnp.sum(onehot, axis=2)
    return (2.0 * inter + eps) / (denom + eps)


def _reference_ce(cls_pred, cls_target):
    logits = cls_pred.astype(jnp.float32)
    lse = jax.scipy.special.logsumexp(logits, axis=1)
    picked = jnp.take_along_axis(logits, cls_target[:, None], axis=1)[:, 0]
    return jnp.mean(lse - picked)


def _reference_loss(seg_pred, seg_target, cls_pred, cls_target,
                    seg_weight=1.0, cls_weight=1.0):
    N, C, H, W = seg_pred.shape
    dice = _reference_dice(seg_pred.reshape(N, C, H * W), seg_target.reshape(N, H * W))
    return seg_weight * (1.0 - jnp.mean(dice)) + cls_weight * _reference_ce(cls_pred, cls_target)


if __name__ == "__main__":
    key = jax.random.PRNGKey(0)
    k1, k2, k3, k4 = jax.random.split(key, 4)

    # 1) Full dual-task loss (f32, even N -> S=1, single row tile, no masking).
    N, C, H, W, K = 2, 4, 16, 16, 5
    seg_pred = jax.random.normal(k1, (N, C, H, W), dtype=jnp.float32)
    seg_target = jax.random.randint(k2, (N, H, W), 0, C, dtype=jnp.int32)
    cls_pred = jax.random.normal(k3, (N, K), dtype=jnp.float32)
    cls_target = jax.random.randint(k4, (N,), 0, K, dtype=jnp.int32)

    out = jax.block_until_ready(dual_task_loss(seg_pred, seg_target, cls_pred, cls_target))
    ref = _reference_loss(seg_pred, seg_target, cls_pred, cls_target)
    assert jnp.abs(out - ref) < 2e-3, (out, ref)

    # 2) Odd N (megacore split S=2), bf16, multiple row tiles with a partial tile and a
    #    fully out-of-range (index-clamped) phantom tile.
    N2, HW2 = 1, 20 * 128
    sp2 = jax.random.normal(k1, (N2, C, HW2), dtype=jnp.float32).astype(jnp.bfloat16)
    st2 = jax.random.randint(k2, (N2, HW2), 0, C, dtype=jnp.int32)
    d2 = jax.block_until_ready(dice_per_class(sp2, st2, max_tile_px=8 * 128))
    assert jnp.max(jnp.abs(d2 - _reference_dice(sp2, st2))) < 5e-3

    # 3) Lane-tiled fallback (HW not a multiple of 128) with a masked partial lane tile.
    N3, HW3 = 2, 18 * 18
    sp3 = jax.random.normal(k3, (N3, C, HW3), dtype=jnp.float32)
    st3 = jax.random.randint(k4, (N3, HW3), 0, C, dtype=jnp.int32)
    d3 = jax.block_until_ready(dice_per_class(sp3, st3, max_tile_px=128))
    assert jnp.max(jnp.abs(d3 - _reference_dice(sp3, st3))) < 2e-3

    # 4) Row-blocked cross-entropy with a partial last row block.
    N4, K4 = 20, 7
    cp4 = jax.random.normal(k1, (N4, K4), dtype=jnp.float32)
    ct4 = jax.random.randint(k2, (N4,), 0, K4, dtype=jnp.int32)
    ce4 = jax.block_until_ready(cross_entropy_mean(cp4, ct4.reshape(-1, 1), row_tile=8))[0, 0]
    assert jnp.abs(ce4 - _reference_ce(cp4, ct4)) < 1e-4

    print("KERNEL_OK")
</pallas_src>

<mosaic_0001>
module attributes {stable_mosaic.version = 11 : i64} {
  func.func @_dice_sums_kernel(%arg0: i32, %arg1: i32, %arg2: i32, %arg3: memref<1x4x2x128xf32, #tpu.memory_space<vmem>>, %arg4: memref<1x2x128xi32, #tpu.memory_space<vmem>>, %arg5: memref<1x1x3x4xf32, #tpu.memory_space<vmem>>, %arg6: memref<4x1x1xf32, #tpu.memory_space<vmem>>, %arg7: memref<4x1x1xf32, #tpu.memory_space<vmem>>, %arg8: memref<4x1x1xf32, #tpu.memory_space<vmem>>) attributes {dimension_semantics = [#tpu.dimension_semantics<parallel>, #tpu.dimension_semantics<parallel>, #tpu.dimension_semantics<arbitrary>], iteration_bounds = array<i64: 2, 1, 1>, scalar_prefetch = 0 : i64, scratch_operands = 3 : i64, tpu.core_type = #tpu.core_type<tc>, window_params = [{transform_indices = @transform_0, window_bounds = array<i64: 1, 4, 2, 128>}, {transform_indices = @transform_1, window_bounds = array<i64: 1, 2, 128>}, {transform_indices = @transform_2, window_bounds = array<i64: 1, 1, 3, 4>}]} {
    %c0_i32 = arith.constant 0 : i32
    %0 = arith.cmpi eq, %arg2, %c0_i32 : i32
    %1 = arith.extui %0 : i1 to i32
    %c0_i32_0 = arith.constant 0 : i32
    %2 = arith.cmpi ne, %1, %c0_i32_0 : i32
    scf.if %2 {
      %cst_35 = arith.constant 0.000000e+00 : f32
      %47 = vector.broadcast %cst_35 : f32 to vector<4x1x1xf32>
      %c0_36 = arith.constant 0 : index
      %c0_37 = arith.constant 0 : index
      %c0_38 = arith.constant 0 : index
      %48 = vector.load %arg6[%c0_36, %c0_37, %c0_38] : memref<4x1x1xf32, #tpu.memory_space<vmem>>, vector<4x1x1xf32>
      tpu.vector_store %arg6[%c0_36, %c0_37, %c0_38], %47 {strides = array<i32>} : memref<4x1x1xf32, #tpu.memory_space<vmem>>, vector<4x1x1xf32>,
      %cst_39 = arith.constant 0.000000e+00 : f32
      %49 = vector.broadcast %cst_39 : f32 to vector<4x1x1xf32>
      %c0_40 = arith.constant 0 : index
      %c0_41 = arith.constant 0 : index
      %c0_42 = arith.constant 0 : index
      %50 = vector.load %arg7[%c0_40, %c0_41, %c0_42] : memref<4x1x1xf32, #tpu.memory_space<vmem>>, vector<4x1x1xf32>
      tpu.vector_store %arg7[%c0_40, %c0_41, %c0_42], %49 {strides = array<i32>} : memref<4x1x1xf32, #tpu.memory_space<vmem>>, vector<4x1x1xf32>,
      %cst_43 = arith.constant 0.000000e+00 : f32
      %51 = vector.broadcast %cst_43 : f32 to vector<4x1x1xf32>
      %c0_44 = arith.constant 0 : index
      %c0_45 = arith.constant 0 : index
      %c0_46 = arith.constant 0 : index
      %52 = vector.load %arg8[%c0_44, %c0_45, %c0_46] : memref<4x1x1xf32, #tpu.memory_space<vmem>>, vector<4x1x1xf32>
      tpu.vector_store %arg8[%c0_44, %c0_45, %c0_46], %51 {strides = array<i32>} : memref<4x1x1xf32, #tpu.memory_space<vmem>>, vector<4x1x1xf32>,
    } else {
    }
    %c0 = arith.constant 0 : index
    %c0_1 = arith.constant 0 : index
    %c0_2 = arith.constant 0 : index
    %c0_3 = arith.constant 0 : index
    %3 = vector.load %arg3[%c0, %c0_1, %c0_2, %c0_3] : memref<1x4x2x128xf32, #tpu.memory_space<vmem>>, vector<1x4x2x128xf32>
    %4 = vector.shape_cast %3 : vector<1x4x2x128xf32> to vector<4x2x128xf32>
    %c0_4 = arith.constant 0 : index
    %c0_5 = arith.constant 0 : index
    %c0_6 = arith.constant 0 : index
    %5 = vector.load %arg4[%c0_4, %c0_5, %c0_6] : memref<1x2x128xi32, #tpu.memory_space<vmem>>, vector<1x2x128xi32>
    %cst = arith.constant dense<0xFF800000> : vector<2x128xf32>
    %6 = vector.multi_reduction <maximumf>, %4, %cst [0] : vector<4x2x128xf32> to vector<2x128xf32>
    %7 = vector.shape_cast %6 : vector<2x128xf32> to vector<1x2x128xf32>
    %8 = vector.broadcast %7 : vector<1x2x128xf32> to vector<4x2x128xf32>
    %9 = arith.subf %4, %8 : vector<4x2x128xf32>
    %10 = math.exp %9 : vector<4x2x128xf32>
    %cst_7 = arith.constant dense<0.000000e+00> : vector<2x128xf32>
    %11 = vector.multi_reduction <add>, %10, %cst_7 [0] : vector<4x2x128xf32> to vector<2x128xf32>
    %12 = vector.shape_cast %11 : vector<2x128xf32> to vector<1x2x128xf32>
    %13 = tpu.reciprocal %12 {approx = true} : vector<1x2x128xf32> -> vector<1x2x128xf32>
    %14 = vector.broadcast %13 : vector<1x2x128xf32> to vector<4x2x128xf32>
    %15 = arith.mulf %10, %14 : vector<4x2x128xf32>
    %16 = tpu.iota {dimensions = array<i32: 0>} : vector<4x2x128xi32>
    %17 = vector.broadcast %5 : vector<1x2x128xi32> to vector<4x2x128xi32>
    %18 = arith.cmpi eq, %16, %17 : vector<4x2x128xi32>
    %19 = arith.extui %18 : vector<4x2x128xi1> to vector<4x2x128xi32>
    %20 = arith.sitofp %19 : vector<4x2x128xi32> to vector<4x2x128xf32>
    %c0_8 = arith.constant 0 : index
    %c0_9 = arith.constant 0 : index
    %c0_10 = arith.constant 0 : index
    %21 = vector.load %arg6[%c0_8, %c0_9, %c0_10] : memref<4x1x1xf32, #tpu.memory_space<vmem>>, vector<4x1x1xf32>
    %cst_11 = arith.constant 0.000000e+00 : f32
    %22 = vector.broadcast %cst_11 : f32 to vector<4x2x128xf32>
    %23 = arith.select %18, %15, %22 : vector<4x2x128xi1>, vector<4x2x128xf32>
    %cst_12 = arith.constant dense<0.000000e+00> : vector<4x2xf32>
    %24 = vector.multi_reduction <add>, %23, %cst_12 [2] : vector<4x2x128xf32> to vector<4x2xf32>
    %25 = vector.shape_cast %24 : vector<4x2xf32> to vector<4x2x1xf32>
    %cst_13 = arith.constant dense<0.000000e+00> : vector<4x1xf32>
    %26 = vector.multi_reduction <add>, %25, %cst_13 [1] : vector<4x2x1xf32> to vector<4x1xf32>
    %27 = vector.shape_cast %26 : vector<4x1xf32> to vector<4x1x1xf32>
    %28 = arith.addf %21, %27 : vector<4x1x1xf32>
    %c0_14 = arith.constant 0 : index
    %c0_15 = arith.constant 0 : index
    %c0_16 = arith.constant 0 : index
    %29 = vector.load %arg6[%c0_14, %c0_15, %c0_16] : memref<4x1x1xf32, #tpu.memory_space<vmem>>, vector<4x1x1xf32>
    tpu.vector_store %arg6[%c0_14, %c0_15, %c0_16], %28 {strides = array<i32>} : memref<4x1x1xf32, #tpu.memory_space<vmem>>, vector<4x1x1xf32>,
    %c0_17 = arith.constant 0 : index
    %c0_18 = arith.constant 0 : index
    %c0_19 = arith.constant 0 : index
    %30 = vector.load %arg7[%c0_17, %c0_18, %c0_19] : memref<4x1x1xf32, #tpu.memory_space<vmem>>, vector<4x1x1xf32>
    %cst_20 = arith.constant dense<0.000000e+00> : vector<4x2xf32>
    %31 = vector.multi_reduction <add>, %15, %cst_20 [2] : vector<4x2x128xf32> to vector<4x2xf32>
    %32 = vector.shape_cast %31 : vector<4x2xf32> to vector<4x2x1xf32>
    %cst_21 = arith.constant dense<0.000000e+00> : vector<4x1xf32>
    %33 = vector.multi_reduction <add>, %32, %cst_21 [1] : vector<4x2x1xf32> to vector<4x1xf32>
    %34 = vector.shape_cast %33 : vector<4x1xf32> to vector<4x1x1xf32>
    %35 = arith.addf %30, %34 : vector<4x1x1xf32>
    %c0_22 = arith.constant 0 : index
    %c0_23 = arith.constant 0 : index
    %c0_24 = arith.constant 0 : index
    %36 = vector.load %arg7[%c0_22, %c0_23, %c0_24] : memref<4x1x1xf32, #tpu.memory_space<vmem>>, vector<4x1x1xf32>
    tpu.vector_store %arg7[%c0_22, %c0_23, %c0_24], %35 {strides = array<i32>} : memref<4x1x1xf32, #tpu.memory_space<vmem>>, vector<4x1x1xf32>,
    %c0_25 = arith.constant 0 : index
    %c0_26 = arith.constant 0 : index
    %c0_27 = arith.constant 0 : index
    %37 = vector.load %arg8[%c0_25, %c0_26, %c0_27] : memref<4x1x1xf32, #tpu.memory_space<vmem>>, vector<4x1x1xf32>
    %cst_28 = arith.constant dense<0.000000e+00> : vector<4x2xf32>
    %38 = vector.multi_reduction <add>, %20, %cst_28 [2] : vector<4x2x128xf32> to vector<4x2xf32>
    %39 = vector.shape_cast %38 : vector<4x2xf32> to vector<4x2x1xf32>
    %cst_29 = arith.constant dense<0.000000e+00> : vector<4x1xf32>
    %40 = vector.multi_reduction <add>, %39, %cst_29 [1] : vector<4x2x1xf32> to vector<4x1xf32>
    %41 = vector.shape_cast %40 : vector<4x1xf32> to vector<4x1x1xf32>
    %42 = arith.addf %37, %41 : vector<4x1x1xf32>
    %c0_30 = arith.constant 0 : index
    %c0_31 = arith.constant 0 : index
    %c0_32 = arith.constant 0 : index
    %43 = vector.load %arg8[%c0_30, %c0_31, %c0_32] : memref<4x1x1xf32, #tpu.memory_space<vmem>>, vector<4x1x1xf32>
    tpu.vector_store %arg8[%c0_30, %c0_31, %c0_32], %42 {strides = array<i32>} : memref<4x1x1xf32, #tpu.memory_space<vmem>>, vector<4x1x1xf32>,
    %c0_i32_33 = arith.constant 0 : i32
    %44 = arith.cmpi eq, %arg2, %c0_i32_33 : i32
    %45 = arith.extui %44 : i1 to i32
    %c0_i32_34 = arith.constant 0 : i32
    %46 = arith.cmpi ne, %45, %c0_i32_34 : i32
    scf.if %46 {
      %47 = tpu.iota {dimensions = array<i32: 0>} : vector<4x3x4xi32>
      %48 = tpu.iota {dimensions = array<i32: 2>} : vector<4x3x4xi32>
      %49 = tpu.iota {dimensions = array<i32: 1>} : vector<4x3x4xi32>
      %c0_i32_35 = arith.constant 0 : i32
      %50 = vector.broadcast %c0_i32_35 : i32 to vector<4x3x4xi32>
      %51 = arith.cmpi eq, %49, %50 : vector<4x3x4xi32>
      %c0_36 = arith.constant 0 : index
      %c0_37 = arith.constant 0 : index
      %c0_38 = arith.constant 0 : index
      %52 = vector.load %arg6[%c0_36, %c0_37, %c0_38] : memref<4x1x1xf32, #tpu.memory_space<vmem>>, vector<4x1x1xf32>
      %c1_i32 = arith.constant 1 : i32
      %53 = vector.broadcast %c1_i32 : i32 to vector<4x3x4xi32>
      %54 = arith.cmpi eq, %49, %53 : vector<4x3x4xi32>
      %c0_39 = arith.constant 0 : index
      %c0_40 = arith.constant 0 : index
      %c0_41 = arith.constant 0 : index
      %55 = vector.load %arg7[%c0_39, %c0_40, %c0_41] : memref<4x1x1xf32, #tpu.memory_space<vmem>>, vector<4x1x1xf32>
      %c0_42 = arith.constant 0 : index
      %c0_43 = arith.constant 0 : index
      %c0_44 = arith.constant 0 : index
      %56 = vector.load %arg8[%c0_42, %c0_43, %c0_44] : memref<4x1x1xf32, #tpu.memory_space<vmem>>, vector<4x1x1xf32>
      %57 = vector.shape_cast %55 : vector<4x1x1xf32> to vector<4x1x1xf32>
      %58 = vector.broadcast %57 : vector<4x1x1xf32> to vector<4x3x4xf32>
      %59 = vector.shape_cast %56 : vector<4x1x1xf32> to vector<4x1x1xf32>
      %60 = vector.broadcast %59 : vector<4x1x1xf32> to vector<4x3x4xf32>
      %61 = arith.select %54, %58, %60 : vector<4x3x4xi1>, vector<4x3x4xf32>
      %62 = vector.shape_cast %52 : vector<4x1x1xf32> to vector<4x1x1xf32>
      %63 = vector.broadcast %62 : vector<4x1x1xf32> to vector<4x3x4xf32>
      %64 = arith.select %51, %63, %61 : vector<4x3x4xi1>, vector<4x3x4xf32>
      %65 = arith.cmpi eq, %47, %48 : vector<4x3x4xi32>
      %cst_45 = arith.constant 0.000000e+00 : f32
      %66 = vector.broadcast %cst_45 : f32 to vector<4x3x4xf32>
      %67 = arith.select %65, %64, %66 : vector<4x3x4xi1>, vector<4x3x4xf32>
      %cst_46 = arith.constant dense<0.000000e+00> : vector<3x4xf32>
      %68 = vector.multi_reduction <add>, %67, %cst_46 [0] : vector<4x3x4xf32> to vector<3x4xf32>
      %69 = vector.shape_cast %68 : vector<3x4xf32> to vector<1x1x3x4xf32>
      %c0_47 = arith.constant 0 : index
      %c0_48 = arith.constant 0 : index
      %c0_49 = arith.constant 0 : index
      %c0_50 = arith.constant 0 : index
      %70 = vector.load %arg5[%c0_47, %c0_48, %c0_49, %c0_50] : memref<1x1x3x4xf32, #tpu.memory_space<vmem>>, vector<1x1x3x4xf32>
      tpu.vector_store %arg5[%c0_47, %c0_48, %c0_49, %c0_50], %69 {strides = array<i32>} : memref<1x1x3x4xf32, #tpu.memory_space<vmem>>, vector<1x1x3x4xf32>,
    } else {
    }
    return
  }
  func.func @transform_0(%arg0: i32, %arg1: i32, %arg2: i32) -> (i32, i32, i32, i32) {
    %c1_i32 = arith.constant 1 : i32
    %0 = arith.muli %arg1, %c1_i32 : i32
    %1 = arith.addi %0, %arg2 : i32
    %c0_i32 = arith.constant 0 : i32
    %c0_i32_0 = arith.constant 0 : i32
    %c0_i32_1 = arith.constant 0 : i32
    return %arg0, %c0_i32, %1, %c0_i32_0 : i32, i32, i32, i32
  }
  func.func @transform_1(%arg0: i32, %arg1: i32, %arg2: i32) -> (i32, i32, i32) {
    %c1_i32 = arith.constant 1 : i32
    %0 = arith.muli %arg1, %c1_i32 : i32
    %1 = arith.addi %0, %arg2 : i32
    %c0_i32 = arith.constant 0 : i32
    %c0_i32_0 = arith.constant 0 : i32
    return %arg0, %1, %c0_i32 : i32, i32, i32
  }
  func.func @transform_2(%arg0: i32, %arg1: i32, %arg2: i32) -> (i32, i32, i32, i32) {
    %c0_i32 = arith.constant 0 : i32
    %c0_i32_0 = arith.constant 0 : i32
    %c0_i32_1 = arith.constant 0 : i32
    return %arg0, %arg1, %c0_i32, %c0_i32_0 : i32, i32, i32, i32
  }
}

</mosaic_0001>

<llo_original>
// kernel: tpu_custom_call.1
$region0: #{tpu_custom_call.1}
  #allocation0 [shape = 'u32[]', space=smem, size = 0x4, offset = 0x4, fixed_abs, tag = 'smem constant byte address 0x4 - core index']
  #allocation1 [shape = 'u32[144,128]{1,0:T(1,128)}', space=vmem, size = 0x12000, scoped, tag = 'internal scratch']
  #allocation2 [shape = 'f32[4,1,1]{2,1,0:T(1,128)}', space=vmem, size = 0x800, scoped, tag = 'scratch operand']
  #allocation3 [shape = 'f32[4,1,1]{2,1,0:T(1,128)}', space=vmem, size = 0x800, scoped, tag = 'scratch operand']
  #allocation4 [shape = 'f32[4,1,1]{2,1,0:T(1,128)}', space=vmem, size = 0x800, scoped, tag = 'scratch operand']
  %s0 = inlined_call_operand.hbm [shape: f32[2,4,2,128], index: 0, kind: input, shape index: {}]
  %s1 = inlined_call_operand.hbm [shape: s32[2,2,128], index: 1, kind: input, shape index: {}]
  %s2 = inlined_call_operand.vmem [shape: f32[2,1,3,4], index: 2, kind: output, shape index: {}]
  %s3 = sld [smem:[#allocation0]]
  $region57: #{tpu_custom_call.1} parent=0
    _
  %s5 = ssub.s32 1, %s3
  %s6 = scalar_select 0, %s5, %s3
  $region1: #{tpu_custom_call.1} parent=0
    #allocation5 [shape = 'u8[8192]{0}', space=vmem, size = 0x2000, scoped, tag = 'input window, operand 0']
    #allocation6 [shape = 's32[2]{0}', space=sflag, size = 0x8, scoped, tag = 'scoped memory for tpu_custom_call.1']
    #allocation7 [shape = 'u8[2048]{0}', space=vmem, size = 0x800, scoped, tag = 'input window, operand 1']
    #allocation8 [shape = 's32[2]{0}', space=sflag, size = 0x8, scoped, tag = 'scoped memory for tpu_custom_call.1']
    %7 = vsyncpa [#allocation6], 0
    %s8 = scalar_lea.sflag [#allocation6], 1
    %9 = vsyncpa %s8, 0
    %10 = vsyncpa [#allocation8], 0
    %s11 = scalar_lea.sflag [#allocation8], 1
    %12 = vsyncpa %s11, 0
    loop: start=0, step=1, limit=4
    $region2: #{tpu_custom_call.1} parent=1 // loop_pre_header
      _
    $region3: #{tpu_custom_call.1} parent=1 // loop_header
      %s14 = sphi 0, %s18
      %p15 = scmp.ge.s32.totalorder %s14, 4
      %s21 = sphi 0, %s40
      %s22 = sphi 0, %s36
      %s23 = sphi 0, %s32
      %s24 = sphi 0, %s21
      %s25 = sphi 0, %s22
      %s26 = sphi 0, %s23
      %s27 = sphi 0, %s24
      %s28 = sphi 0, %s25
      %s29 = sphi 0, %s26
      %s47 = sphi 0, %s49
      %s50 = sphi 0, %s47
      %s51 = sphi 0, %s50
      %s67 = sphi 0, %s51
      %s77 = sphi 0, %s79
      %s80 = sphi 0, %s77
      %s81 = sphi 0, %s80
      %s97 = sphi 0, %s81
      %s105 = sphi 0, %s107
      %s108 = sphi 0, %s105
      %s109 = sphi 0, %s108
      %s125 = sphi 0, %s109
    $region4: #{tpu_custom_call.1} parent=1 // loop_header_branch
      %17 = sbr.rel (%p15) target = $region8
    $region5: #{tpu_custom_call.1} parent=1 // loop_body
      %s19 = ssub.s32 %s14, 1
      %s20 = ssub.s32 %s14, 2
      %s30 = sadd.s32 1, %s23
      %p31 = scmp.ge.s32.totalorder %s30, 1
      %s32 = scalar_select %p31, 0, %s30
      %s33 = sadd.s32 1, %s22
      %s34 = scalar_select %p31, %s33, %s22
      %p35 = scmp.ge.s32.totalorder %s34, 1
      %s36 = scalar_select %p35, 0, %s34
      %s37 = sadd.s32 1, %s21
      %s38 = scalar_select %p35, %s37, %s21
      %p39 = scmp.ge.s32.totalorder %s38, 2
      %s40 = scalar_select %p39, 0, %s38
      %s41 = sadd.s32 %s22, %s23
      %s42 = sadd.s32 %s36, %s32
      %s43 = ssub.s32 %s21, %s40
      %s44 = ssub.s32 %s41, %s42
      %s45 = sor.u32 %s43, %s44
      %p46 = scmp.eq.s32.totalorder %s45, 0
      %s48 = sadd.s32 %s47, 1
      %s49 = scalar_select %p46, %s47, %s48
      %p52 = pneg %p46
      %p53 = scmp.eq.s32.totalorder %s14, 1
      %p54 = por %p52, %p53
      %p55 = scmp.ne.s32.totalorder %s47, %s50
      %p56 = scmp.eq.s32.totalorder %s14, 0
      %p57 = por %p55, %p56
      %p58 = scmp.ne.s32.totalorder %s47, %s50
      %p59 = scmp.eq.s32.totalorder %s19, 1
      %p60 = por %p58, %p59
      %p61 = scmp.ne.s32.totalorder %s50, %s51
      %p62 = scmp.eq.s32.totalorder %s19, 0
      %p63 = por %p61, %p62
      %p64 = scmp.ne.s32.totalorder %s50, %s51
      %p65 = scmp.eq.s32.totalorder %s20, 1
      %p66 = por %p64, %p65
      %p68 = scmp.ne.s32.totalorder %s51, %s67
      %p69 = scmp.eq.s32.totalorder %s20, 0
      %p70 = por %p68, %p69
      %s71 = sadd.s32 %s22, %s23
      %s72 = sadd.s32 %s36, %s32
      %s73 = ssub.s32 %s21, %s40
      %s74 = ssub.s32 %s71, %s72
      %s75 = sor.u32 %s73, %s74
      %p76 = scmp.eq.s32.totalorder %s75, 0
      %s78 = sadd.s32 %s77, 1
      %s79 = scalar_select %p76, %s77, %s78
      %p82 = pneg %p76
      %p83 = scmp.eq.s32.totalorder %s14, 1
      %p84 = por %p82, %p83
      %p85 = scmp.ne.s32.totalorder %s77, %s80
      %p86 = scmp.eq.s32.totalorder %s14, 0
      %p87 = por %p85, %p86
      %p88 = scmp.ne.s32.totalorder %s77, %s80
      %p89 = scmp.eq.s32.totalorder %s19, 1
      %p90 = por %p88, %p89
      %p91 = scmp.ne.s32.totalorder %s80, %s81
      %p92 = scmp.eq.s32.totalorder %s19, 0
      %p93 = por %p91, %p92
      %p94 = scmp.ne.s32.totalorder %s80, %s81
      %p95 = scmp.eq.s32.totalorder %s20, 1
      %p96 = por %p94, %p95
      %p98 = scmp.ne.s32.totalorder %s81, %s97
      %p99 = scmp.eq.s32.totalorder %s20, 0
      %p100 = por %p98, %p99
      %s101 = ssub.s32 %s21, %s40
      %s102 = ssub.s32 %s22, %s36
      %s103 = sor.u32 %s101, %s102
      %p104 = scmp.eq.s32.totalorder %s103, 0
      %s106 = sadd.s32 %s105, 1
      %s107 = scalar_select %p104, %s105, %s106
      %p110 = pneg %p104
      %p111 = scmp.eq.s32.totalorder %s14, 1
      %p112 = por %p110, %p111
      %p113 = scmp.ne.s32.totalorder %s105, %s108
      %p114 = scmp.eq.s32.totalorder %s14, 0
      %p115 = por %p113, %p114
      %p116 = scmp.ne.s32.totalorder %s105, %s108
      %p117 = scmp.eq.s32.totalorder %s19, 1
      %p118 = por %p116, %p117
      %p119 = scmp.ne.s32.totalorder %s108, %s109
      %p120 = scmp.eq.s32.totalorder %s19, 0
      %p121 = por %p119, %p120
      %p122 = scmp.ne.s32.totalorder %s108, %s109
      %p123 = scmp.eq.s32.totalorder %s20, 1
      %p124 = por %p122, %p123
      %p126 = scmp.ne.s32.totalorder %s109, %s125
      %p127 = scmp.eq.s32.totalorder %s20, 0
      %p128 = por %p126, %p127
      %p129 = scmp.le.s32.totalorder 1, %s14
      %p130 = scmp.lt.s32.totalorder %s14, 3
      %p131 = pnand %p129, %p130
      %p132 = pneg %p131
      // Predicated region
      $region9: #{tpu_custom_call.1} parent=5 // pred_check
        _
      $region10: #{tpu_custom_call.1} parent=5 // pred_check_branch
        %134 = sbr.rel (%p131) target = $region12
      $region11: #{tpu_custom_call.1} parent=5 // pred_region
        %s135 = ssub.s32 %s14, 1
      $region12: #{tpu_custom_call.1} parent=5 // pred_fallthru
        _
      %p136 = scmp.lt.s32.totalorder %s14, 2
      // Predicated region
      $region13: #{tpu_custom_call.1} parent=5 // pred_check
        %p137 = pneg %p136
      $region14: #{tpu_custom_call.1} parent=5 // pred_check_branch
        %139 = sbr.rel (%p137) target = $region16
      $region15: #{tpu_custom_call.1} parent=5 // pred_region
        // Predicated region
        $region17: #{tpu_custom_call.1} parent=15 // pred_check
          %p140 = pneg %p57
        $region18: #{tpu_custom_call.1} parent=15 // pred_check_branch
          %142 = sbr.rel (%p140) target = $region20
        $region19: #{tpu_custom_call.1} parent=15 // pred_region
          %s143 = sand.u32 %s47, 1
          %s144 = scalar_lea.sflag [#allocation6], %s143
          %s145 = sand.u32 %s47, 1
          %s146 = smul.addr %s145, 8
          %s147 = scalar_lea.vmem [#allocation5], %s146
          %s148 = sadd.s32 %s22, %s23
          %s150 = ssub.s32 128, 128
          %151 = vsyncadd %s144, %s150
          %s152 = smul.addr %s21, 4
          %s153 = sadd.s32 %s148, %s152
          %s154 = smul.addr %s153, 32
          %s155 = scalar_lea.hbm %s0, %s154
          %s156 = sshll.u32 %s147, 4
          %s157 = int_to_ptr.vmem [resolvable:$true] %s156
          %162 = dma.hbm_to_vmem [thread:$0]  %s155, 128, %s157, %s144, 32, 32, 2
        $region20: #{tpu_custom_call.1} parent=15 // pred_fallthru
          _
        // Predicated region
        $region21: #{tpu_custom_call.1} parent=15 // pred_check
          %p163 = pneg %p87
        $region22: #{tpu_custom_call.1} parent=15 // pred_check_branch
          %165 = sbr.rel (%p163) target = $region24
        $region23: #{tpu_custom_call.1} parent=15 // pred_region
          %s166 = sand.u32 %s77, 1
          %s167 = scalar_lea.sflag [#allocation8], %s166
          %s168 = sand.u32 %s77, 1
          %s169 = smul.addr %s168, 2
          %s170 = scalar_lea.vmem [#allocation7], %s169
          %s171 = sadd.s32 %s22, %s23
          %s173 = ssub.s32 32, 32
          %174 = vsyncadd %s167, %s173
          %s175 = sadd.s32 %s171, %s21
          %s176 = smul.addr %s175, 32
          %s177 = scalar_lea.hbm %s1, %s176
          %s179 = sshll.u32 %s170, 4
          %s180 = int_to_ptr.vmem [resolvable:$true] %s179
          %182 = dma.hbm_to_vmem [thread:$0]  %s177, 32, %s180, %s167
        $region24: #{tpu_custom_call.1} parent=15 // pred_fallthru
          _
      $region16: #{tpu_custom_call.1} parent=5 // pred_fallthru
        _
      %p183 = scmp.le.s32.totalorder 1, %s14
      %p184 = scmp.lt.s32.totalorder %s14, 3
      %p185 = pnand %p183, %p184
      %p186 = pneg %p185
      // Predicated region
      $region25: #{tpu_custom_call.1} parent=5 // pred_check
        _
      $region26: #{tpu_custom_call.1} parent=5 // pred_check_branch
        %188 = sbr.rel (%p185) target = $region28
      $region27: #{tpu_custom_call.1} parent=5 // pred_region
        %s189 = ssub.s32 %s14, 1
        %s190 = sand.u32 %s50, 1
        %s191 = scalar_lea.sflag [#allocation6], %s190
        %s192 = sand.u32 %s50, 1
        %s193 = smul.addr %s192, 8
        %s194 = scalar_lea.vmem [#allocation5], %s193
        // Predicated region
        $region29: #{tpu_custom_call.1} parent=27 // pred_check
          %p195 = pneg %p63
        $region30: #{tpu_custom_call.1} parent=27 // pred_check_branch
          %197 = sbr.rel (%p195) target = $region32
        $region31: #{tpu_custom_call.1} parent=27 // pred_region
          %198 = dma.done %s191, 128
        $region32: #{tpu_custom_call.1} parent=27 // pred_fallthru
          _
        %s199 = sand.u32 %s80, 1
        %s200 = scalar_lea.sflag [#allocation8], %s199
        %s201 = sand.u32 %s80, 1
        %s202 = smul.addr %s201, 2
        %s203 = scalar_lea.vmem [#allocation7], %s202
        // Predicated region
        $region33: #{tpu_custom_call.1} parent=27 // pred_check
          %p204 = pneg %p93
        $region34: #{tpu_custom_call.1} parent=27 // pred_check_branch
          %206 = sbr.rel (%p204) target = $region36
        $region35: #{tpu_custom_call.1} parent=27 // pred_region
          %207 = dma.done %s200, 32
        $region36: #{tpu_custom_call.1} parent=27 // pred_fallthru
          _
        %s208 = sand.u32 %s50, 1
        %s209 = scalar_lea.sflag [#allocation6], %s208
        %s210 = sand.u32 %s50, 1
        %s211 = smul.addr %s210, 8
        %s212 = scalar_lea.vmem [#allocation5], %s211
        %p213 = pneg %p63
        %p214 = pneg %p60
        %s215 = sand.u32 %s80, 1
        %s216 = scalar_lea.sflag [#allocation8], %s215
        %s217 = sand.u32 %s80, 1
        %s218 = smul.addr %s217, 2
        %s219 = scalar_lea.vmem [#allocation7], %s218
        %p220 = pneg %p93
        %p221 = pneg %p90
        %p222 = pneg %p121
        %p223 = pneg %p118
        %p224 = scmp.lt.s32.totalorder %s24, 1
        %s225 = scalar_select %p224, %s24, 1
        %p226 = scmp.lt.s32.totalorder %s25, 0
        %s227 = scalar_select %p226, %s25, 0
        %s228 = sadd.s32 %s227, %s225
        %s229 = smul.addr %s228, 4
        %s230 = scalar_lea.vmem %s2, %s229
        %s231 = sadd.s32 %s25, %s26
        %s232 = sadd.s32 %s25, %s26
        %p233 = scmp.lt.s32.totalorder %s24, 1
        %s234 = scalar_select %p233, %s24, 1
        %p235 = scmp.lt.s32.totalorder %s25, 0
        %s236 = scalar_select %p235, %s25, 0
        %s237 = sadd.s32 %s236, %s234
        %s238 = smul.addr %s237, 4
        %s239 = scalar_lea.vmem %s2, %s238
        %p240 = scmp.eq.s32.totalorder %s26, 0
        // Predicated region
        $region37: #{tpu_custom_call.1} parent=27 // pred_check
          %p241 = pneg %p240
        $region38: #{tpu_custom_call.1} parent=27 // pred_check_branch
          %243 = sbr.rel (%p241) target = $region40
        $region39: #{tpu_custom_call.1} parent=27 // pred_region
          %vm244 = vcmask 0
          %245 = vst.msk [vmem:[#allocation2] sm:$0x1] %vm244, 0.0
          %246 = vst.msk [vmem:[#allocation2 + $0x1] sm:$0x1] %vm244, 0.0
          %247 = vst.msk [vmem:[#allocation2 + $0x2] sm:$0x1] %vm244, 0.0
          %248 = vst.msk [vmem:[#allocation2 + $0x3] sm:$0x1] %vm244, 0.0
          %249 = vst.msk [vmem:[#allocation3] sm:$0x1] %vm244, 0.0
          %250 = vst.msk [vmem:[#allocation3 + $0x1] sm:$0x1] %vm244, 0.0
          %251 = vst.msk [vmem:[#allocation3 + $0x2] sm:$0x1] %vm244, 0.0
          %252 = vst.msk [vmem:[#allocation3 + $0x3] sm:$0x1] %vm244, 0.0
          %253 = vst.msk [vmem:[#allocation4] sm:$0x1] %vm244, 0.0
          %254 = vst.msk [vmem:[#allocation4 + $0x1] sm:$0x1] %vm244, 0.0
          %255 = vst.msk [vmem:[#allocation4 + $0x2] sm:$0x1] %vm244, 0.0
          %256 = vst.msk [vmem:[#allocation4 + $0x3] sm:$0x1] %vm244, 0.0
        $region40: #{tpu_custom_call.1} parent=27 // pred_fallthru
          _
        %v257 = vld [vmem:[%s194] sm:$0x3]
        %v258 = vld [vmem:[%s194 + $0x2] sm:$0x3]
        %v259 = vld [vmem:[%s194 + $0x4] sm:$0x3]
        %v260 = vld [vmem:[%s194 + $0x6] sm:$0x3]
        %v261 = vld [vmem:[%s203] sm:$0x3]
        %vm262 = vcmask 1041408
        %v263 = vsel %vm262, %v257, -inf
        %v264 = vsel %vm262, %v258, -inf
        %v265 = vsel %vm262, %v259, -inf
        %v266 = vsel %vm262, %v260, -inf
        %v267 = vmax.f32 %v263, %v264
        %v268 = vmax.f32 %v265, %v266
        %v269 = vmax.f32 %v267, %v268
        %v270 = vsub.f32 %v257, %v269
        %v271 = vsub.f32 %v258, %v269
        %v272 = vsub.f32 %v259, %v269
        %v273 = vsub.f32 %v260, %v269
        %v274 = vmul.f32 %v270, 1.442695
        %v275 = vpow.pop %v274
        %v276 = vmul.f32 %v271, 1.442695
        %v277 = vpow.pop %v276
        %v278 = vmul.f32 %v272, 1.442695
        %v279 = vpow.pop %v278
        %v280 = vmul.f32 %v273, 1.442695
        %v281 = vpow.pop %v280
        %v282 = vsel %vm262, %v275, 0.0
        %v283 = vsel %vm262, %v277, 0.0
        %v284 = vadd.f32 %v282, %v283
        %v285 = vsel %vm262, %v279, 0.0
        %v286 = vadd.f32 %v284, %v285
        %v287 = vsel %vm262, %v281, 0.0
        %v288 = vadd.f32 %v286, %v287
        %v289 = vrcp.pop %v288
        %v290 = vmul.f32 %v275, %v289
        %v291 = vmul.f32 %v277, %v289
        %v292 = vmul.f32 %v279, %v289
        %v293 = vmul.f32 %v281, %v289
        %vm294 = vcmp.eq.s32.totalorder %v261, 0
        %vm295 = vcmp.eq.s32.totalorder %v261, 1
        %vm296 = vcmp.eq.s32.totalorder %v261, 2
        %vm297 = vcmp.eq.s32.totalorder %v261, 3
        %v298 = vsel %vm294, 1, 0
        %v299 = vsel %vm295, 1, 0
        %v300 = vsel %vm296, 1, 0
        %v301 = vsel %vm297, 1, 0
        %v302 = vcvt.s32.f32 %v298
        %v303 = vcvt.s32.f32 %v299
        %v304 = vcvt.s32.f32 %v300
        %v305 = vcvt.s32.f32 %v301
        %v306 = vld [vmem:[#allocation2] sm:$0x1]
        %v307 = vld [vmem:[#allocation2 + $0x1] sm:$0x1]
        %v308 = vld [vmem:[#allocation2 + $0x2] sm:$0x1]
        %v309 = vld [vmem:[#allocation2 + $0x3] sm:$0x1]
        %v310 = vsel %vm294, %v290, 0.0
        %v311 = vsel %vm295, %v291, 0.0
        %v312 = vsel %vm296, %v292, 0.0
        %v313 = vsel %vm297, %v293, 0.0
        %v314 = vsel %vm262, %v310, 0.0
        %315 = vadd.xlane.f32.xlu0 %v314
        %v316 = vpop.xlane.xlu0 %315
        %v317 = vsel %vm262, %v311, 0.0
        %318 = vadd.xlane.f32.xlu0 %v317
        %v319 = vpop.xlane.xlu0 %318
        %v320 = vsel %vm262, %v312, 0.0
        %321 = vadd.xlane.f32.xlu0 %v320
        %v322 = vpop.xlane.xlu0 %321
        %v323 = vsel %vm262, %v313, 0.0
        %324 = vadd.xlane.f32.xlu0 %v323
        %v325 = vpop.xlane.xlu0 %324
        %v326 = vsel %vm262, %v316, 0.0
        %v327 = vrot.slane %v326, 4
        %v328 = vadd.f32 %v326, %v327
        %v329 = vrot.slane %v328, 2
        %v330 = vadd.f32 %v328, %v329
        %v331 = vrot.slane %v330, 1
        %v332 = vadd.f32 %v330, %v331
        %v333 = vsel %vm262, %v319, 0.0
        %v334 = vrot.slane %v333, 4
        %v335 = vadd.f32 %v333, %v334
        %v336 = vrot.slane %v335, 2
        %v337 = vadd.f32 %v335, %v336
        %v338 = vrot.slane %v337, 1
        %v339 = vadd.f32 %v337, %v338
        %v340 = vsel %vm262, %v322, 0.0
        %v341 = vrot.slane %v340, 4
        %v342 = vadd.f32 %v340, %v341
        %v343 = vrot.slane %v342, 2
        %v344 = vadd.f32 %v342, %v343
        %v345 = vrot.slane %v344, 1
        %v346 = vadd.f32 %v344, %v345
        %v347 = vsel %vm262, %v325, 0.0
        %v348 = vrot.slane %v347, 4
        %v349 = vadd.f32 %v347, %v348
        %v350 = vrot.slane %v349, 2
        %v351 = vadd.f32 %v349, %v350
        %v352 = vrot.slane %v351, 1
        %v353 = vadd.f32 %v351, %v352
        %v354 = vadd.f32 %v306, %v332
        %v355 = vadd.f32 %v307, %v339
        %v356 = vadd.f32 %v308, %v346
        %v357 = vadd.f32 %v309, %v353
        %vm358 = vcmask 0
        %359 = vst.msk [vmem:[#allocation2] sm:$0x1] %vm358, %v354
        %360 = vst.msk [vmem:[#allocation2 + $0x1] sm:$0x1] %vm358, %v355
        %361 = vst.msk [vmem:[#allocation2 + $0x2] sm:$0x1] %vm358, %v356
        %362 = vst.msk [vmem:[#allocation2 + $0x3] sm:$0x1] %vm358, %v357
        %v363 = vld [vmem:[#allocation3] sm:$0x1]
        %v364 = vld [vmem:[#allocation3 + $0x1] sm:$0x1]
        %v365 = vld [vmem:[#allocation3 + $0x2] sm:$0x1]
        %v366 = vld [vmem:[#allocation3 + $0x3] sm:$0x1]
        %v367 = vsel %vm262, %v290, 0.0
        %368 = vadd.xlane.f32.xlu0 %v367
        %v369 = vpop.xlane.xlu0 %368
        %v370 = vsel %vm262, %v291, 0.0
        %371 = vadd.xlane.f32.xlu0 %v370
        %v372 = vpop.xlane.xlu0 %371
        %v373 = vsel %vm262, %v292, 0.0
        %374 = vadd.xlane.f32.xlu0 %v373
        %v375 = vpop.xlane.xlu0 %374
        %v376 = vsel %vm262, %v293, 0.0
        %377 = vadd.xlane.f32.xlu0 %v376
        %v378 = vpop.xlane.xlu0 %377
        %v379 = vsel %vm262, %v369, 0.0
        %v380 = vrot.slane %v379, 4
        %v381 = vadd.f32 %v379, %v380
        %v382 = vrot.slane %v381, 2
        %v383 = vadd.f32 %v381, %v382
        %v384 = vrot.slane %v383, 1
        %v385 = vadd.f32 %v383, %v384
        %v386 = vsel %vm262, %v372, 0.0
        %v387 = vrot.slane %v386, 4
        %v388 = vadd.f32 %v386, %v387
        %v389 = vrot.slane %v388, 2
        %v390 = vadd.f32 %v388, %v389
        %v391 = vrot.slane %v390, 1
        %v392 = vadd.f32 %v390, %v391
        %v393 = vsel %vm262, %v375, 0.0
        %v394 = vrot.slane %v393, 4
        %v395 = vadd.f32 %v393, %v394
        %v396 = vrot.slane %v395, 2
        %v397 = vadd.f32 %v395, %v396
        %v398 = vrot.slane %v397, 1
        %v399 = vadd.f32 %v397, %v398
        %v400 = vsel %vm262, %v378, 0.0
        %v401 = vrot.slane %v400, 4
        %v402 = vadd.f32 %v400, %v401
        %v403 = vrot.slane %v402, 2
        %v404 = vadd.f32 %v402, %v403
        %v405 = vrot.slane %v404, 1
        %v406 = vadd.f32 %v404, %v405
        %v407 = vadd.f32 %v363, %v385
        %v408 = vadd.f32 %v364, %v392
        %v409 = vadd.f32 %v365, %v399
        %v410 = vadd.f32 %v366, %v406
        %411 = vst.msk [vmem:[#allocation3] sm:$0x1] %vm358, %v407
        %412 = vst.msk [vmem:[#allocation3 + $0x1] sm:$0x1] %vm358, %v408
        %413 = vst.msk [vmem:[#allocation3 + $0x2] sm:$0x1] %vm358, %v409
        %414 = vst.msk [vmem:[#allocation3 + $0x3] sm:$0x1] %vm358, %v410
        %v415 = vld [vmem:[#allocation4] sm:$0x1]
        %v416 = vld [vmem:[#allocation4 + $0x1] sm:$0x1]
        %v417 = vld [vmem:[#allocation4 + $0x2] sm:$0x1]
        %v418 = vld [vmem:[#allocation4 + $0x3] sm:$0x1]
        %v419 = vsel %vm262, %v302, 0.0
        %420 = vadd.xlane.f32.xlu0 %v419
        %v421 = vpop.xlane.xlu0 %420
        %v422 = vsel %vm262, %v303, 0.0
        %423 = vadd.xlane.f32.xlu0 %v422
        %v424 = vpop.xlane.xlu0 %423
        %v425 = vsel %vm262, %v304, 0.0
        %426 = vadd.xlane.f32.xlu0 %v425
        %v427 = vpop.xlane.xlu0 %426
        %v428 = vsel %vm262, %v305, 0.0
        %429 = vadd.xlane.f32.xlu0 %v428
        %v430 = vpop.xlane.xlu0 %429
        %v431 = vsel %vm262, %v421, 0.0
        %v432 = vrot.slane %v431, 4
        %v433 = vadd.f32 %v431, %v432
        %v434 = vrot.slane %v433, 2
        %v435 = vadd.f32 %v433, %v434
        %v436 = vrot.slane %v435, 1
        %v437 = vadd.f32 %v435, %v436
        %v438 = vsel %vm262, %v424, 0.0
        %v439 = vrot.slane %v438, 4
        %v440 = vadd.f32 %v438, %v439
        %v441 = vrot.slane %v440, 2
        %v442 = vadd.f32 %v440, %v441
        %v443 = vrot.slane %v442, 1
        %v444 = vadd.f32 %v442, %v443
        %v445 = vsel %vm262, %v427, 0.0
        %v446 = vrot.slane %v445, 4
        %v447 = vadd.f32 %v445, %v446
        %v448 = vrot.slane %v447, 2
        %v449 = vadd.f32 %v447, %v448
        %v450 = vrot.slane %v449, 1
        %v451 = vadd.f32 %v449, %v450
        %v452 = vsel %vm262, %v430, 0.0
        %v453 = vrot.slane %v452, 4
        %v454 = vadd.f32 %v452, %v453
        %v455 = vrot.slane %v454, 2
        %v456 = vadd.f32 %v454, %v455
        %v457 = vrot.slane %v456, 1
        %v458 = vadd.f32 %v456, %v457
        %v459 = vadd.f32 %v415, %v437
        %v460 = vadd.f32 %v416, %v444
        %v461 = vadd.f32 %v417, %v451
        %v462 = vadd.f32 %v418, %v458
        %463 = vst.msk [vmem:[#allocation4] sm:$0x1] %vm358, %v459
        %464 = vst.msk [vmem:[#allocation4 + $0x1] sm:$0x1] %vm358, %v460
        %465 = vst.msk [vmem:[#allocation4 + $0x2] sm:$0x1] %vm358, %v461
        %466 = vst.msk [vmem:[#allocation4 + $0x3] sm:$0x1] %vm358, %v462
        // Predicated region
        $region41: #{tpu_custom_call.1} parent=27 // pred_check
          %p467 = pneg %p240
        $region42: #{tpu_custom_call.1} parent=27 // pred_check_branch
          %469 = sbr.rel (%p467) target = $region44
        $region43: #{tpu_custom_call.1} parent=27 // pred_region
          %v470 = vlaneseq
          %v471 = vand.u32 %v470, 127
          %v472 = vlaneseq
          %v473 = vshrl.u32 %v472, 7
          %vm474 = vcmp.eq.s32.totalorder %v473, 0
          %v475 = vld [vmem:[#allocation2] sm:$0x1]
          %v476 = vld [vmem:[#allocation2 + $0x1] sm:$0x1]
          %v477 = vld [vmem:[#allocation2 + $0x2] sm:$0x1]
          %v478 = vld [vmem:[#allocation2 + $0x3] sm:$0x1]
          %vm479 = vcmp.eq.s32.totalorder %v473, 1
          %v480 = vld [vmem:[#allocation3] sm:$0x1]
          %v481 = vld [vmem:[#allocation3 + $0x1] sm:$0x1]
          %v482 = vld [vmem:[#allocation3 + $0x2] sm:$0x1]
          %v483 = vld [vmem:[#allocation3 + $0x3] sm:$0x1]
          %v484 = vld [vmem:[#allocation4] sm:$0x1]
          %v485 = vld [vmem:[#allocation4 + $0x1] sm:$0x1]
          %v486 = vld [vmem:[#allocation4 + $0x2] sm:$0x1]
          %v487 = vld [vmem:[#allocation4 + $0x3] sm:$0x1]
          %v492 = vlaneseq
          %v493 = vshrl.u32 %v492, 7
          %v494 = vsub.s32 0, %v493
          %v495 = vrot.slane %v480, %v494
          %v496 = vlaneseq
          %v497 = vshrl.u32 %v496, 7
          %v498 = vsub.s32 0, %v497
          %v499 = vrot.slane %v481, %v498
          %v500 = vlaneseq
          %v501 = vshrl.u32 %v500, 7
          %v502 = vsub.s32 0, %v501
          %v503 = vrot.slane %v482, %v502
          %v504 = vlaneseq
          %v505 = vshrl.u32 %v504, 7
          %v506 = vsub.s32 0, %v505
          %v507 = vrot.slane %v483, %v506
          %508 = vset.pattern.permute.xlu0 0
          %509 = vperm.xlu0 %508, %v495
          %v510 = vpop.permute.xlu0 %509
          %512 = vset.pattern.permute.xlu0 0
          %513 = vperm.xlu0 %512, %v499
          %v514 = vpop.permute.xlu0 %513
          %516 = vset.pattern.permute.xlu0 0
          %517 = vperm.xlu0 %516, %v503
          %v518 = vpop.permute.xlu0 %517
          %520 = vset.pattern.permute.xlu0 0
          %521 = vperm.xlu0 %520, %v507
          %v522 = vpop.permute.xlu0 %521
          %v528 = vlaneseq
          %v529 = vshrl.u32 %v528, 7
          %v530 = vsub.s32 0, %v529
          %v531 = vrot.slane %v484, %v530
          %v532 = vlaneseq
          %v533 = vshrl.u32 %v532, 7
          %v534 = vsub.s32 0, %v533
          %v535 = vrot.slane %v485, %v534
          %v536 = vlaneseq
          %v537 = vshrl.u32 %v536, 7
          %v538 = vsub.s32 0, %v537
          %v539 = vrot.slane %v486, %v538
          %v540 = vlaneseq
          %v541 = vshrl.u32 %v540, 7
          %v542 = vsub.s32 0, %v541
          %v543 = vrot.slane %v487, %v542
          %544 = vset.pattern.permute.xlu0 0
          %545 = vperm.xlu0 %544, %v531
          %v546 = vpop.permute.xlu0 %545
          %548 = vset.pattern.permute.xlu0 0
          %549 = vperm.xlu0 %548, %v535
          %v550 = vpop.permute.xlu0 %549
          %552 = vset.pattern.permute.xlu0 0
          %553 = vperm.xlu0 %552, %v539
          %v554 = vpop.permute.xlu0 %553
          %556 = vset.pattern.permute.xlu0 0
          %557 = vperm.xlu0 %556, %v543
          %v558 = vpop.permute.xlu0 %557
          %v560 = vsel %vm479, %v510, %v546
          %v561 = vsel %vm479, %v514, %v550
          %v562 = vsel %vm479, %v518, %v554
          %v563 = vsel %vm479, %v522, %v558
          %v568 = vlaneseq
          %v569 = vshrl.u32 %v568, 7
          %v570 = vsub.s32 0, %v569
          %v571 = vrot.slane %v475, %v570
          %v572 = vlaneseq
          %v573 = vshrl.u32 %v572, 7
          %v574 = vsub.s32 0, %v573
          %v575 = vrot.slane %v476, %v574
          %v576 = vlaneseq
          %v577 = vshrl.u32 %v576, 7
          %v578 = vsub.s32 0, %v577
          %v579 = vrot.slane %v477, %v578
          %v580 = vlaneseq
          %v581 = vshrl.u32 %v580, 7
          %v582 = vsub.s32 0, %v581
          %v583 = vrot.slane %v478, %v582
          %584 = vset.pattern.permute.xlu0 0
          %585 = vperm.xlu0 %584, %v571
          %v586 = vpop.permute.xlu0 %585
          %588 = vset.pattern.permute.xlu0 0
          %589 = vperm.xlu0 %588, %v575
          %v590 = vpop.permute.xlu0 %589
          %592 = vset.pattern.permute.xlu0 0
          %593 = vperm.xlu0 %592, %v579
          %v594 = vpop.permute.xlu0 %593
          %596 = vset.pattern.permute.xlu0 0
          %597 = vperm.xlu0 %596, %v583
          %v598 = vpop.permute.xlu0 %597
          %v600 = vsel %vm474, %v586, %v560
          %v601 = vsel %vm474, %v590, %v561
          %v602 = vsel %vm474, %v594, %v562
          %v603 = vsel %vm474, %v598, %v563
          %vm604 = vcmp.eq.s32.totalorder %v471, 0
          %vm605 = vcmp.eq.s32.totalorder %v471, 1
          %vm606 = vcmp.eq.s32.totalorder %v471, 2
          %vm607 = vcmp.eq.s32.totalorder %v471, 3
          %v608 = vsel %vm604, %v600, 0.0
          %v609 = vsel %vm605, %v601, 0.0
          %v610 = vsel %vm606, %v602, 0.0
          %v611 = vsel %vm607, %v603, 0.0
          %vm612 = vcmask 26624
          %v613 = vsel %vm612, %v608, 0.0
          %v614 = vsel %vm612, %v609, 0.0
          %v615 = vadd.f32 %v613, %v614
          %v616 = vsel %vm612, %v610, 0.0
          %v617 = vadd.f32 %v615, %v616
          %v618 = vsel %vm612, %v611, 0.0
          %v619 = vadd.f32 %v617, %v618
          %620 = vst.msk [vmem:[%s239] sm:$0x7] %vm612, %v619
        $region44: #{tpu_custom_call.1} parent=27 // pred_fallthru
          _
        %p621 = scmp.lt.s32.totalorder %s24, 1
        %s622 = scalar_select %p621, %s24, 1
        %p623 = scmp.lt.s32.totalorder %s25, 0
        %s624 = scalar_select %p623, %s25, 0
        %s625 = sadd.s32 %s624, %s622
        %s626 = smul.addr %s625, 4
        %s627 = scalar_lea.vmem %s2, %s626
        // Predicated region
        $region45: #{tpu_custom_call.1} parent=27 // pred_check
          %p628 = pneg %p118
        $region46: #{tpu_custom_call.1} parent=27 // pred_check_branch
          %630 = sbr.rel (%p628) target = $region48
        $region47: #{tpu_custom_call.1} parent=27 // pred_region
          _
        $region48: #{tpu_custom_call.1} parent=27 // pred_fallthru
          _
      $region28: #{tpu_custom_call.1} parent=5 // pred_fallthru
        _
      %p631 = scmp.le.s32.totalorder 2, %s14
      // Predicated region
      $region49: #{tpu_custom_call.1} parent=5 // pred_check
        %p632 = pneg %p631
      $region50: #{tpu_custom_call.1} parent=5 // pred_check_branch
        %634 = sbr.rel (%p632) target = $region52
      $region51: #{tpu_custom_call.1} parent=5 // pred_region
        %s635 = ssub.s32 %s14, 2
        // Predicated region
        $region53: #{tpu_custom_call.1} parent=51 // pred_check
          %p636 = pneg %p124
        $region54: #{tpu_custom_call.1} parent=51 // pred_check_branch
          %638 = sbr.rel (%p636) target = $region56
        $region55: #{tpu_custom_call.1} parent=51 // pred_region
          %p639 = scmp.lt.s32.totalorder %s27, 1
          %s640 = scalar_select %p639, %s27, 1
          %p641 = scmp.lt.s32.totalorder %s28, 0
          %s642 = scalar_select %p641, %s28, 0
          %s643 = sadd.s32 %s642, %s640
          %s644 = smul.addr %s643, 4
          %s645 = scalar_lea.vmem %s2, %s644
        $region56: #{tpu_custom_call.1} parent=51 // pred_fallthru
          _
      $region52: #{tpu_custom_call.1} parent=5 // pred_fallthru
        _
    $region6: #{tpu_custom_call.1} parent=1 // loop_footer
      %s18 = sadd.s32 1, %s14
    $region7: #{tpu_custom_call.1} parent=1 // loop_footer_branch
      %13 = sbr.rel target = $region3
    $region8: #{tpu_custom_call.1} parent=1 // loop_exit
      _
    %646 = vsyncpa [#allocation6], 1
    %s647 = scalar_lea.sflag [#allocation6], 1
    %648 = vsyncpa %s647, 1
    %649 = vsyncpa [#allocation8], 1
    %s650 = scalar_lea.sflag [#allocation8], 1
    %651 = vsyncpa %s650, 1

</llo_original>
